<compile_context>
chip_gen: v5e
topology: v5e:2x2
jax: 0.10.0
libtpu: 0.0.40
codegen_flags: <defaults>
</compile_context>

<pallas_src>
import functools

import jax
import jax.numpy as jnp
from jax import lax
from jax.experimental import pallas as pl
from jax.experimental.pallas import tpu as pltpu

BN_EPS = 1e-5


def _fused_linear_bn_kernel(*refs, mxu_dtype, add_residual, apply_relu):
    """One grid step of: out = act( BN_train( x @ w ) [+ residual] ).

    Grid = (feature_tiles, k_tiles); k (contraction) is innermost/"arbitrary".
    refs = (x, w, gamma, beta, [residual], out, acc_scratch).
    """
    if add_residual:
        x_ref, w_ref, g_ref, be_ref, res_ref, o_ref, acc_ref = refs
    else:
        x_ref, w_ref, g_ref, be_ref, o_ref, acc_ref = refs
        res_ref = None

    k = pl.program_id(1)

    @pl.when(k == 0)
    def _():
        acc_ref[...] = jnp.zeros_like(acc_ref)

    # MXU matmul (bf16 fast path on v6e/v7x), f32 accumulation in VMEM scratch.
    # astype is a no-op when the operand is already in mxu_dtype (pre-cast in
    # the wrapper for weights / the stage-1 activation).
    acc_ref[...] += jnp.dot(x_ref[...].astype(mxu_dtype),
                            w_ref[...].astype(mxu_dtype),
                            preferred_element_type=jnp.float32)

    @pl.when(k == pl.num_programs(1) - 1)
    def _():
        h = acc_ref[...]
        # Training-mode BatchNorm1d over the batch axis (biased variance),
        # single pass: var = E[h^2] - E[h]^2.  (Linear bias omitted: exactly
        # cancelled by the mean subtraction.)
        mean = jnp.mean(h, axis=0, keepdims=True)
        mean_sq = jnp.mean(h * h, axis=0, keepdims=True)
        var = jnp.maximum(mean_sq - mean * mean, 0.0)
        # Fused normalize: one FMA per element; rsqrt runs on the EUP slot.
        a = g_ref[...] * lax.rsqrt(var + BN_EPS)
        c = be_ref[...] - mean * a
        out = h * a + c
        if add_residual:
            out = out + res_ref[...].astype(jnp.float32)
        if apply_relu:
            out = jnp.maximum(out, 0.0)
        o_ref[...] = out.astype(o_ref.dtype)


def _pick_tile(dim, max_tile):
    """Largest 128-multiple tile <= max_tile that divides `dim`; else whole dim."""
    if dim <= max_tile or dim % 128 != 0:
        return dim
    for t in (512, 384, 256, 128):
        if t <= max_tile and dim % t == 0:
            return t
    return dim


def _fused_linear_bn(x, w, gamma, beta, residual, *, apply_relu, mxu_dtype,
                     block_features, block_k, out_dtype):
    """out = act( BN_train( x @ w ) [+ residual] ), tiled over (features, K)."""
    N, K = x.shape
    Kw, F = w.shape
    assert K == Kw
    tk = _pick_tile(K, block_k)
    tf = _pick_tile(F, block_features)
    grid = (F // tf, K // tk)

    in_specs = [
        pl.BlockSpec((N, tk), lambda j, k: (0, k)),    # x      (batch, K-tile)
        pl.BlockSpec((tk, tf), lambda j, k: (k, j)),   # w      (K-tile, F-tile)
        pl.BlockSpec((1, tf), lambda j, k: (0, j)),    # gamma  (k-invariant)
        pl.BlockSpec((1, tf), lambda j, k: (0, j)),    # beta   (k-invariant)
    ]
    args = [x, w, gamma.reshape(1, F), beta.reshape(1, F)]
    if residual is not None:
        in_specs.append(pl.BlockSpec((N, tf), lambda j, k: (0, j)))
        args.append(residual)

    kernel = functools.partial(
        _fused_linear_bn_kernel,
        mxu_dtype=mxu_dtype,
        add_residual=residual is not None,
        apply_relu=apply_relu,
    )

    n_res = 1 if residual is not None else 0
    itemsize_x = jnp.dtype(x.dtype).itemsize
    itemsize_w = jnp.dtype(w.dtype).itemsize
    itemsize_o = jnp.dtype(out_dtype).itemsize
    cost = pl.CostEstimate(
        flops=2 * N * K * F + 8 * N * F,
        transcendentals=F,                                   # rsqrt per feature
        bytes_accessed=(itemsize_x * N * K * (F // tf)       # x re-read per F-tile
                        + itemsize_w * K * F
                        + 4 * 2 * F
                        + 4 * n_res * N * F
                        + itemsize_o * N * F),
    )

    return pl.pallas_call(
        kernel,
        out_shape=jax.ShapeDtypeStruct((N, F), out_dtype),
        grid_spec=pltpu.PrefetchScalarGridSpec(
            num_scalar_prefetch=0,
            grid=grid,
            in_specs=in_specs,
            out_specs=pl.BlockSpec((N, tf), lambda j, k: (0, j)),
            scratch_shapes=[pltpu.VMEM((N, tf), jnp.float32)],
        ),
        compiler_params=pltpu.CompilerParams(
            dimension_semantics=("parallel", "arbitrary"),
            vmem_limit_bytes=64 * 1024 * 1024,
        ),
        cost_estimate=cost,
    )(*args)


def res_layer_bn(x, params, *, mxu_dtype=jnp.bfloat16,
                 block_features=512, block_k=512):
    """ResLayerBN forward. x: (N, D) float32; requires in_dim == out_dim == D."""
    N, D = x.shape
    # Pre-transpose to (in, out) for row-major MXU matmul and pre-cast to the
    # MXU dtype once in the wrapper (halves weight HBM traffic on the bf16 path
    # instead of casting every tile in-kernel).
    w1 = params["w1"].T.astype(mxu_dtype)
    w2 = params["w2"].T.astype(mxu_dtype)
    # Intermediate activation dtype: bf16 on the fast path (it only feeds the
    # stage-2 MXU, which would cast it anyway), f32 on the exact path.
    h_dtype = mxu_dtype if mxu_dtype != jnp.float32 else jnp.float32

    # Stage 1: h = relu(BN1(x @ W1^T))         (bias b1 dropped: cancelled by BN)
    h = _fused_linear_bn(x, w1, params["g1"], params["be1"], None,
                         apply_relu=True, mxu_dtype=mxu_dtype,
                         block_features=block_features, block_k=block_k,
                         out_dtype=h_dtype)
    # Stage 2: out = relu(BN2(h @ W2^T) + x)   (bias b2 dropped: cancelled by BN)
    return _fused_linear_bn(h, w2, params["g2"], params["be2"], x,
                            apply_relu=True, mxu_dtype=mxu_dtype,
                            block_features=block_features, block_k=block_k,
                            out_dtype=x.dtype)


def _reference(x, params):
    """Pure-JAX reference of the PyTorch forward (training-mode BN, with biases)."""
    def bn(h, g, b):
        m = jnp.mean(h, axis=0, keepdims=True)
        v = jnp.mean((h - m) ** 2, axis=0, keepdims=True)
        return (h - m) / jnp.sqrt(v + BN_EPS) * g + b

    h = x @ params["w1"].T + params["b1"]
    h = jnp.maximum(bn(h, params["g1"], params["be1"]), 0.0)
    h2 = h @ params["w2"].T + params["b2"]
    h2 = bn(h2, params["g2"], params["be2"])
    return jnp.maximum(h2 + x, 0.0)


def init_params(key, dim):
    """Deterministic init mimicking PyTorch defaults (uniform +- 1/sqrt(fan_in))."""
    ks = jax.random.split(key, 4)
    bound = 1.0 / jnp.sqrt(dim)
    u = lambda k, shape: jax.random.uniform(k, shape, jnp.float32, -bound, bound)
    return {
        "w1": u(ks[0], (dim, dim)), "b1": u(ks[1], (dim,)),
        "g1": jnp.ones((dim,), jnp.float32), "be1": jnp.zeros((dim,), jnp.float32),
        "w2": u(ks[2], (dim, dim)), "b2": u(ks[3], (dim,)),
        "g2": jnp.ones((dim,), jnp.float32), "be2": jnp.zeros((dim,), jnp.float32),
    }


if __name__ == "__main__":
    key = jax.random.PRNGKey(0)
    k_x, k_p = jax.random.split(key)

    # Small but lane-dense shapes; block=128 exercises the (features x K) grid,
    # the K-accumulator, and the BN finalize path (grid = (2, 2) per stage).
    N, D = 16, 256  # batch, in_dim == out_dim (residual requires equality)
    x = jax.random.normal(k_x, (N, D), jnp.float32)
    params = init_params(k_p, D)
    ref = _reference(x, params)

    # f32 MXU path: exact semantics, tight tolerance.
    out_f32 = jax.block_until_ready(
        res_layer_bn(x, params, mxu_dtype=jnp.float32,
                     block_features=128, block_k=128))
    assert out_f32.shape == (N, D)
    assert jnp.allclose(out_f32, ref, atol=1e-4, rtol=1e-4), "f32 path mismatch"

    # bf16 MXU fast path (default; the v6e/v7x throughput path): loose tolerance.
    out_bf16 = jax.block_until_ready(
        res_layer_bn(x, params, block_features=128, block_k=128))
    assert jnp.allclose(out_bf16, ref, atol=1e-1, rtol=1e-1), "bf16 path mismatch"

    # Default (larger) tile path at the same small shapes: grid = (1, 1).
    out_def = jax.block_until_ready(res_layer_bn(x, params))
    assert jnp.allclose(out_def, ref, atol=1e-1, rtol=1e-1), "default path mismatch"

    print("KERNEL_OK")
</pallas_src>

<mosaic_0001>
module attributes {stable_mosaic.version = 11 : i64} {
  func.func @_fused_linear_bn_kernel(%arg0: i32, %arg1: i32, %arg2: memref<16x128xf32, #tpu.memory_space<vmem>>, %arg3: memref<128x128xf32, #tpu.memory_space<vmem>>, %arg4: memref<1x128xf32, #tpu.memory_space<vmem>>, %arg5: memref<1x128xf32, #tpu.memory_space<vmem>>, %arg6: memref<16x128xf32, #tpu.memory_space<vmem>>, %arg7: memref<16x128xf32, #tpu.memory_space<vmem>>) attributes {dimension_semantics = [#tpu.dimension_semantics<parallel>, #tpu.dimension_semantics<arbitrary>], iteration_bounds = array<i64: 2, 2>, scalar_prefetch = 0 : i64, scratch_operands = 1 : i64, tpu.core_type = #tpu.core_type<tc>, window_params = [{transform_indices = @transform_0, window_bounds = array<i64: 16, 128>}, {transform_indices = @transform_1, window_bounds = array<i64: 128, 128>}, {transform_indices = @transform_2, window_bounds = array<i64: 1, 128>}, {transform_indices = @transform_3, window_bounds = array<i64: 1, 128>}, {transform_indices = @transform_4, window_bounds = array<i64: 16, 128>}]} {
    %c0_i32 = arith.constant 0 : i32
    %0 = arith.cmpi eq, %arg1, %c0_i32 : i32
    %1 = arith.extui %0 : i1 to i32
    %c0_i32_0 = arith.constant 0 : i32
    %2 = arith.cmpi ne, %1, %c0_i32_0 : i32
    scf.if %2 {
      %cst_9 = arith.constant 0.000000e+00 : f32
      %12 = vector.broadcast %cst_9 : f32 to vector<16x128xf32>
      %c0_10 = arith.constant 0 : index
      %c0_11 = arith.constant 0 : index
      %13 = vector.load %arg7[%c0_10, %c0_11] : memref<16x128xf32, #tpu.memory_space<vmem>>, vector<16x128xf32>
      tpu.vector_store %arg7[%c0_10, %c0_11], %12 {strides = array<i32>} : memref<16x128xf32, #tpu.memory_space<vmem>>, vector<16x128xf32>,
    } else {
    }
    %c0 = arith.constant 0 : index
    %c0_1 = arith.constant 0 : index
    %3 = vector.load %arg7[%c0, %c0_1] : memref<16x128xf32, #tpu.memory_space<vmem>>, vector<16x128xf32>
    %c0_2 = arith.constant 0 : index
    %c0_3 = arith.constant 0 : index
    %4 = vector.load %arg2[%c0_2, %c0_3] : memref<16x128xf32, #tpu.memory_space<vmem>>, vector<16x128xf32>
    %c0_4 = arith.constant 0 : index
    %c0_5 = arith.constant 0 : index
    %5 = vector.load %arg3[%c0_4, %c0_5] : memref<128x128xf32, #tpu.memory_space<vmem>>, vector<128x128xf32>
    %cst = arith.constant dense<0.000000e+00> : vector<16x128xf32>
    %6 = tpu.matmul %4, %5, %cst {dimension_numbers = #tpu.dot_dimension_numbers<[1], [0], [0], [1], [0, 0, 1, 1], [], []>} : vector<16x128xf32>, vector<128x128xf32>, vector<16x128xf32> -> vector<16x128xf32>
    %7 = arith.addf %3, %6 : vector<16x128xf32>
    %c0_6 = arith.constant 0 : index
    %c0_7 = arith.constant 0 : index
    %8 = vector.load %arg7[%c0_6, %c0_7] : memref<16x128xf32, #tpu.memory_space<vmem>>, vector<16x128xf32>
    tpu.vector_store %arg7[%c0_6, %c0_7], %7 {strides = array<i32>} : memref<16x128xf32, #tpu.memory_space<vmem>>, vector<16x128xf32>,
    %c1_i32 = arith.constant 1 : i32
    %9 = arith.cmpi eq, %arg1, %c1_i32 : i32
    %10 = arith.extui %9 : i1 to i32
    %c0_i32_8 = arith.constant 0 : i32
    %11 = arith.cmpi ne, %10, %c0_i32_8 : i32
    scf.if %11 {
      %c0_9 = arith.constant 0 : index
      %c0_10 = arith.constant 0 : index
      %12 = vector.load %arg7[%c0_9, %c0_10] : memref<16x128xf32, #tpu.memory_space<vmem>>, vector<16x128xf32>
      %cst_11 = arith.constant dense<0.000000e+00> : vector<128xf32>
      %13 = vector.multi_reduction <add>, %12, %cst_11 [0] : vector<16x128xf32> to vector<128xf32>
      %14 = vector.shape_cast %13 : vector<128xf32> to vector<1x128xf32>
      %cst_12 = arith.constant 1.600000e+01 : f32
      %15 = vector.broadcast %cst_12 : f32 to vector<1x128xf32>
      %16 = arith.divf %14, %15 : vector<1x128xf32>
      %17 = arith.mulf %12, %12 : vector<16x128xf32>
      %cst_13 = arith.constant dense<0.000000e+00> : vector<128xf32>
      %18 = vector.multi_reduction <add>, %17, %cst_13 [0] : vector<16x128xf32> to vector<128xf32>
      %19 = vector.shape_cast %18 : vector<128xf32> to vector<1x128xf32>
      %cst_14 = arith.constant 1.600000e+01 : f32
      %20 = vector.broadcast %cst_14 : f32 to vector<1x128xf32>
      %21 = arith.divf %19, %20 : vector<1x128xf32>
      %22 = arith.mulf %16, %16 : vector<1x128xf32>
      %23 = arith.subf %21, %22 : vector<1x128xf32>
      %cst_15 = arith.constant 0.000000e+00 : f32
      %24 = vector.broadcast %cst_15 : f32 to vector<1x128xf32>
      %25 = arith.maximumf %23, %24 : vector<1x128xf32>
      %c0_16 = arith.constant 0 : index
      %c0_17 = arith.constant 0 : index
      %26 = vector.load %arg4[%c0_16, %c0_17] : memref<1x128xf32, #tpu.memory_space<vmem>>, vector<1x128xf32>
      %cst_18 = arith.constant 9.99999974E-6 : f32
      %27 = vector.broadcast %cst_18 : f32 to vector<1x128xf32>
      %28 = arith.addf %25, %27 : vector<1x128xf32>
      %29 = math.rsqrt %28 : vector<1x128xf32>
      %30 = arith.mulf %26, %29 : vector<1x128xf32>
      %c0_19 = arith.constant 0 : index
      %c0_20 = arith.constant 0 : index
      %31 = vector.load %arg5[%c0_19, %c0_20] : memref<1x128xf32, #tpu.memory_space<vmem>>, vector<1x128xf32>
      %32 = arith.mulf %16, %30 : vector<1x128xf32>
      %33 = arith.subf %31, %32 : vector<1x128xf32>
      %34 = vector.broadcast %30 : vector<1x128xf32> to vector<16x128xf32>
      %35 = arith.mulf %12, %34 : vector<16x128xf32>
      %36 = vector.broadcast %33 : vector<1x128xf32> to vector<16x128xf32>
      %37 = arith.addf %35, %36 : vector<16x128xf32>
      %cst_21 = arith.constant 0.000000e+00 : f32
      %38 = vector.broadcast %cst_21 : f32 to vector<16x128xf32>
      %39 = arith.maximumf %37, %38 : vector<16x128xf32>
      %c0_22 = arith.constant 0 : index
      %c0_23 = arith.constant 0 : index
      %40 = vector.load %arg6[%c0_22, %c0_23] : memref<16x128xf32, #tpu.memory_space<vmem>>, vector<16x128xf32>
      tpu.vector_store %arg6[%c0_22, %c0_23], %39 {strides = array<i32>} : memref<16x128xf32, #tpu.memory_space<vmem>>, vector<16x128xf32>,
    } else {
    }
    return
  }
  func.func @transform_0(%arg0: i32, %arg1: i32) -> (i32, i32) {
    %c0_i32 = arith.constant 0 : i32
    %c0_i32_0 = arith.constant 0 : i32
    return %c0_i32, %arg1 : i32, i32
  }
  func.func @transform_1(%arg0: i32, %arg1: i32) -> (i32, i32) {
    %c0_i32 = arith.constant 0 : i32
    return %arg1, %arg0 : i32, i32
  }
  func.func @transform_2(%arg0: i32, %arg1: i32) -> (i32, i32) {
    %c0_i32 = arith.constant 0 : i32
    %c0_i32_0 = arith.constant 0 : i32
    return %c0_i32, %arg0 : i32, i32
  }
  func.func @transform_3(%arg0: i32, %arg1: i32) -> (i32, i32) {
    %c0_i32 = arith.constant 0 : i32
    %c0_i32_0 = arith.constant 0 : i32
    return %c0_i32, %arg0 : i32, i32
  }
  func.func @transform_4(%arg0: i32, %arg1: i32) -> (i32, i32) {
    %c0_i32 = arith.constant 0 : i32
    %c0_i32_0 = arith.constant 0 : i32
    return %c0_i32, %arg0 : i32, i32
  }
}

</mosaic_0001>

<llo_original>
// kernel: tpu_custom_call.1
$region0: #{tpu_custom_call.1}
  #allocation0 [shape = 'u32[]', space=smem, size = 0x4, offset = 0x4, fixed_abs, tag = 'smem constant byte address 0x4 - core index']
  #allocation1 [shape = 'u32[72,128]{1,0:T(1,128)}', space=vmem, size = 0x9000, scoped, tag = 'internal scratch']
  #allocation2 [shape = 'f32[16,128]{1,0:T(8,128)}', space=vmem, size = 0x2000, scoped, tag = 'scratch operand']
  %s0 = inlined_call_operand.hbm [shape: f32[16,256], index: 0, kind: input, shape index: {}]
  %s1 = inlined_call_operand.hbm [shape: f32[256,256], index: 1, kind: input, shape index: {}]
  %s2 = inlined_call_operand.hbm [shape: f32[1,256], index: 2, kind: input, shape index: {}]
  %s3 = inlined_call_operand.vmem [shape: f32[1,256], index: 3, kind: input, shape index: {}]
  %s4 = inlined_call_operand.hbm [shape: f32[16,256], index: 4, kind: output, shape index: {}]
  %s5 = sld [smem:[#allocation0]]
  $region69: #{tpu_custom_call.1} parent=0
    _
  %s7 = ssub.s32 1, %s5
  %s8 = scalar_select 0, %s7, %s5
  $region1: #{tpu_custom_call.1} parent=0
    #allocation3 [shape = 'u8[16384]{0}', space=vmem, size = 0x4000, scoped, tag = 'input window, operand 0']
    #allocation4 [shape = 's32[2]{0}', space=sflag, size = 0x8, scoped, tag = 'scoped memory for tpu_custom_call.1']
    #allocation5 [shape = 's32[2]{0}', space=sflag, size = 0x8, scoped, tag = 'scoped memory for tpu_custom_call.1']
    #allocation6 [shape = 'u8[131072]{0}', space=vmem, size = 0x20000, scoped, tag = 'input window, operand 1']
    #allocation7 [shape = 's32[2]{0}', space=sflag, size = 0x8, scoped, tag = 'scoped memory for tpu_custom_call.1']
    #allocation8 [shape = 'u8[1024]{0}', space=vmem, size = 0x400, scoped, tag = 'input window, operand 2']
    #allocation9 [shape = 'u8[16384]{0}', space=vmem, size = 0x4000, scoped, tag = 'output window, operand 0']
    %9 = vsyncpa [#allocation4], 0
    %s10 = scalar_lea.sflag [#allocation4], 1
    %11 = vsyncpa %s10, 0
    %12 = vsyncpa [#allocation7], 0
    %s13 = scalar_lea.sflag [#allocation7], 1
    %14 = vsyncpa %s13, 0
    %15 = vsyncpa [#allocation5], 0
    %s16 = scalar_lea.sflag [#allocation5], 1
    %17 = vsyncpa %s16, 0
    loop: start=0, step=1, limit=6
    $region2: #{tpu_custom_call.1} parent=1 // loop_pre_header
      _
    $region3: #{tpu_custom_call.1} parent=1 // loop_header
      %s19 = sphi 0, %s23
      %p20 = scmp.ge.s32.totalorder %s19, 6
      %s26 = sphi 0, %s38
      %s27 = sphi 0, %s34
      %s28 = sphi 0, %s26
      %s29 = sphi 0, %s27
      %s30 = sphi 0, %s28
      %s31 = sphi 0, %s29
      %s41 = sphi 0, %s43
      %s44 = sphi 0, %s41
      %s45 = sphi 0, %s44
      %s61 = sphi 0, %s45
      %s69 = sphi 0, %s71
      %s72 = sphi 0, %s69
      %s73 = sphi 0, %s72
      %s89 = sphi 0, %s73
      %s95 = sphi 0, %s97
      %s98 = sphi 0, %s95
      %s99 = sphi 0, %s98
      %s115 = sphi 0, %s99
      %s121 = sphi 0, %s123
      %s124 = sphi 0, %s121
      %s125 = sphi 0, %s124
      %s141 = sphi 0, %s125
      %s147 = sphi 0, %s149
      %s150 = sphi 0, %s147
      %s151 = sphi 0, %s150
      %s167 = sphi 0, %s151
    $region4: #{tpu_custom_call.1} parent=1 // loop_header_branch
      %22 = sbr.rel (%p20) target = $region8
    $region5: #{tpu_custom_call.1} parent=1 // loop_body
      %s24 = ssub.s32 %s19, 1
      %s25 = ssub.s32 %s19, 2
      %s32 = sadd.s32 1, %s27
      %p33 = scmp.ge.s32.totalorder %s32, 2
      %s34 = scalar_select %p33, 0, %s32
      %s35 = sadd.s32 1, %s26
      %s36 = scalar_select %p33, %s35, %s26
      %p37 = scmp.ge.s32.totalorder %s36, 2
      %s38 = scalar_select %p37, 0, %s36
      %s39 = ssub.s32 %s27, %s34
      %p40 = scmp.eq.s32.totalorder %s39, 0
      %s42 = sadd.s32 %s41, 1
      %s43 = scalar_select %p40, %s41, %s42
      %p46 = pneg %p40
      %p47 = scmp.eq.s32.totalorder %s19, 3
      %p48 = por %p46, %p47
      %p49 = scmp.ne.s32.totalorder %s41, %s44
      %p50 = scmp.eq.s32.totalorder %s19, 0
      %p51 = por %p49, %p50
      %p52 = scmp.ne.s32.totalorder %s41, %s44
      %p53 = scmp.eq.s32.totalorder %s24, 3
      %p54 = por %p52, %p53
      %p55 = scmp.ne.s32.totalorder %s44, %s45
      %p56 = scmp.eq.s32.totalorder %s24, 0
      %p57 = por %p55, %p56
      %p58 = scmp.ne.s32.totalorder %s44, %s45
      %p59 = scmp.eq.s32.totalorder %s25, 3
      %p60 = por %p58, %p59
      %p62 = scmp.ne.s32.totalorder %s45, %s61
      %p63 = scmp.eq.s32.totalorder %s25, 0
      %p64 = por %p62, %p63
      %s65 = ssub.s32 %s27, %s34
      %s66 = ssub.s32 %s26, %s38
      %s67 = sor.u32 %s65, %s66
      %p68 = scmp.eq.s32.totalorder %s67, 0
      %s70 = sadd.s32 %s69, 1
      %s71 = scalar_select %p68, %s69, %s70
      %p74 = pneg %p68
      %p75 = scmp.eq.s32.totalorder %s19, 3
      %p76 = por %p74, %p75
      %p77 = scmp.ne.s32.totalorder %s69, %s72
      %p78 = scmp.eq.s32.totalorder %s19, 0
      %p79 = por %p77, %p78
      %p80 = scmp.ne.s32.totalorder %s69, %s72
      %p81 = scmp.eq.s32.totalorder %s24, 3
      %p82 = por %p80, %p81
      %p83 = scmp.ne.s32.totalorder %s72, %s73
      %p84 = scmp.eq.s32.totalorder %s24, 0
      %p85 = por %p83, %p84
      %p86 = scmp.ne.s32.totalorder %s72, %s73
      %p87 = scmp.eq.s32.totalorder %s25, 3
      %p88 = por %p86, %p87
      %p90 = scmp.ne.s32.totalorder %s73, %s89
      %p91 = scmp.eq.s32.totalorder %s25, 0
      %p92 = por %p90, %p91
      %s93 = ssub.s32 %s26, %s38
      %p94 = scmp.eq.s32.totalorder %s93, 0
      %s96 = sadd.s32 %s95, 1
      %s97 = scalar_select %p94, %s95, %s96
      %p100 = pneg %p94
      %p101 = scmp.eq.s32.totalorder %s19, 3
      %p102 = por %p100, %p101
      %p103 = scmp.ne.s32.totalorder %s95, %s98
      %p104 = scmp.eq.s32.totalorder %s19, 0
      %p105 = por %p103, %p104
      %p106 = scmp.ne.s32.totalorder %s95, %s98
      %p107 = scmp.eq.s32.totalorder %s24, 3
      %p108 = por %p106, %p107
      %p109 = scmp.ne.s32.totalorder %s98, %s99
      %p110 = scmp.eq.s32.totalorder %s24, 0
      %p111 = por %p109, %p110
      %p112 = scmp.ne.s32.totalorder %s98, %s99
      %p113 = scmp.eq.s32.totalorder %s25, 3
      %p114 = por %p112, %p113
      %p116 = scmp.ne.s32.totalorder %s99, %s115
      %p117 = scmp.eq.s32.totalorder %s25, 0
      %p118 = por %p116, %p117
      %s119 = ssub.s32 %s26, %s38
      %p120 = scmp.eq.s32.totalorder %s119, 0
      %s122 = sadd.s32 %s121, 1
      %s123 = scalar_select %p120, %s121, %s122
      %p126 = pneg %p120
      %p127 = scmp.eq.s32.totalorder %s19, 3
      %p128 = por %p126, %p127
      %p129 = scmp.ne.s32.totalorder %s121, %s124
      %p130 = scmp.eq.s32.totalorder %s19, 0
      %p131 = por %p129, %p130
      %p132 = scmp.ne.s32.totalorder %s121, %s124
      %p133 = scmp.eq.s32.totalorder %s24, 3
      %p134 = por %p132, %p133
      %p135 = scmp.ne.s32.totalorder %s124, %s125
      %p136 = scmp.eq.s32.totalorder %s24, 0
      %p137 = por %p135, %p136
      %p138 = scmp.ne.s32.totalorder %s124, %s125
      %p139 = scmp.eq.s32.totalorder %s25, 3
      %p140 = por %p138, %p139
      %p142 = scmp.ne.s32.totalorder %s125, %s141
      %p143 = scmp.eq.s32.totalorder %s25, 0
      %p144 = por %p142, %p143
      %s145 = ssub.s32 %s26, %s38
      %p146 = scmp.eq.s32.totalorder %s145, 0
      %s148 = sadd.s32 %s147, 1
      %s149 = scalar_select %p146, %s147, %s148
      %p152 = pneg %p146
      %p153 = scmp.eq.s32.totalorder %s19, 3
      %p154 = por %p152, %p153
      %p155 = scmp.ne.s32.totalorder %s147, %s150
      %p156 = scmp.eq.s32.totalorder %s19, 0
      %p157 = por %p155, %p156
      %p158 = scmp.ne.s32.totalorder %s147, %s150
      %p159 = scmp.eq.s32.totalorder %s24, 3
      %p160 = por %p158, %p159
      %p161 = scmp.ne.s32.totalorder %s150, %s151
      %p162 = scmp.eq.s32.totalorder %s24, 0
      %p163 = por %p161, %p162
      %p164 = scmp.ne.s32.totalorder %s150, %s151
      %p165 = scmp.eq.s32.totalorder %s25, 3
      %p166 = por %p164, %p165
      %p168 = scmp.ne.s32.totalorder %s151, %s167
      %p169 = scmp.eq.s32.totalorder %s25, 0
      %p170 = por %p168, %p169
      %p171 = scmp.le.s32.totalorder 1, %s19
      %p172 = scmp.lt.s32.totalorder %s19, 5
      %p173 = pnand %p171, %p172
      %p174 = pneg %p173
      // Predicated region
      $region9: #{tpu_custom_call.1} parent=5 // pred_check
        _
      $region10: #{tpu_custom_call.1} parent=5 // pred_check_branch
        %176 = sbr.rel (%p173) target = $region12
      $region11: #{tpu_custom_call.1} parent=5 // pred_region
        %s177 = ssub.s32 %s19, 1
      $region12: #{tpu_custom_call.1} parent=5 // pred_fallthru
        _
      %p178 = scmp.lt.s32.totalorder %s19, 4
      // Predicated region
      $region13: #{tpu_custom_call.1} parent=5 // pred_check
        %p179 = pneg %p178
      $region14: #{tpu_custom_call.1} parent=5 // pred_check_branch
        %181 = sbr.rel (%p179) target = $region16
      $region15: #{tpu_custom_call.1} parent=5 // pred_region
        // Predicated region
        $region17: #{tpu_custom_call.1} parent=15 // pred_check
          %p182 = pneg %p51
        $region18: #{tpu_custom_call.1} parent=15 // pred_check_branch
          %184 = sbr.rel (%p182) target = $region20
        $region19: #{tpu_custom_call.1} parent=15 // pred_region
          %s185 = sand.u32 %s41, 1
          %s186 = scalar_lea.sflag [#allocation4], %s185
          %s187 = sand.u32 %s41, 1
          %s188 = smul.addr %s187, 16
          %s189 = scalar_lea.vmem [#allocation3], %s188
          %191 = vsyncadd %s186, 0
          %s192 = smul.addr %s27, 8
          %s193 = scalar_lea.hbm %s0, %s192
          %s194 = sshll.u32 %s193, 4
          %s195 = int_to_ptr.hbm [resolvable:$true] %s194
          %s196 = sshll.u32 %s189, 4
          %s197 = int_to_ptr.vmem [resolvable:$true] %s196
          %202 = dma.hbm_to_vmem [thread:$0]  %s195, 256, %s197, %s186, 256, 128, 8
        $region20: #{tpu_custom_call.1} parent=15 // pred_fallthru
          _
        // Predicated region
        $region21: #{tpu_custom_call.1} parent=15 // pred_check
          %p203 = pneg %p79
        $region22: #{tpu_custom_call.1} parent=15 // pred_check_branch
          %205 = sbr.rel (%p203) target = $region24
        $region23: #{tpu_custom_call.1} parent=15 // pred_region
          %s206 = sand.u32 %s19, 1
          %s207 = scalar_lea.sflag [#allocation7], %s206
          %s208 = sand.u32 %s69, 1
          %s209 = smul.addr %s208, 128
          %s210 = scalar_lea.vmem [#allocation6], %s209
          %s211 = smul.u32 16, %s27
          %213 = vsyncadd %s207, 0
          %s214 = smul.addr %s211, 2
          %s215 = sadd.s32 %s26, %s214
          %s216 = smul.addr %s215, 8
          %s217 = scalar_lea.hbm %s1, %s216
          %s218 = sshll.u32 %s217, 4
          %s219 = int_to_ptr.hbm [resolvable:$true] %s218
          %s220 = sshll.u32 %s210, 4
          %s221 = int_to_ptr.vmem [resolvable:$true] %s220
          %226 = dma.hbm_to_vmem [thread:$0]  %s219, 2048, %s221, %s207, 256, 128, 8
        $region24: #{tpu_custom_call.1} parent=15 // pred_fallthru
          _
        // Predicated region
        $region25: #{tpu_custom_call.1} parent=15 // pred_check
          %p227 = pneg %p105
        $region26: #{tpu_custom_call.1} parent=15 // pred_check_branch
          %229 = sbr.rel (%p227) target = $region28
        $region27: #{tpu_custom_call.1} parent=15 // pred_region
          %s230 = sand.u32 %s19, 1
          %s231 = scalar_lea.sflag [#allocation7], %s230
          %s232 = sand.u32 %s95, 1
          %s233 = scalar_lea.vmem [#allocation8], %s232
          %235 = vsyncadd %s231, 0
          %s236 = scalar_lea.hbm %s2, %s26
          %s238 = sshll.u32 %s236, 4
          %s239 = int_to_ptr.hbm [resolvable:$true] %s238
          %s240 = sshll.u32 %s233, 4
          %s241 = int_to_ptr.vmem [resolvable:$true] %s240
          %243 = dma.hbm_to_vmem [thread:$0]  %s239, 16, %s241, %s231
        $region28: #{tpu_custom_call.1} parent=15 // pred_fallthru
          _
        // Predicated region
        $region29: #{tpu_custom_call.1} parent=15 // pred_check
          %p244 = pneg %p131
        $region30: #{tpu_custom_call.1} parent=15 // pred_check_branch
          %246 = sbr.rel (%p244) target = $region32
        $region31: #{tpu_custom_call.1} parent=15 // pred_region
          %p247 = scmp.lt.s32.totalorder %s26, 1
          %s248 = scalar_select %p247, %s26, 1
          %s249 = scalar_lea.vmem %s3, %s248
        $region32: #{tpu_custom_call.1} parent=15 // pred_fallthru
          _
      $region16: #{tpu_custom_call.1} parent=5 // pred_fallthru
        _
      %p250 = scmp.le.s32.totalorder 1, %s19
      %p251 = scmp.lt.s32.totalorder %s19, 5
      %p252 = pnand %p250, %p251
      %p253 = pneg %p252
      // Predicated region
      $region33: #{tpu_custom_call.1} parent=5 // pred_check
        _
      $region34: #{tpu_custom_call.1} parent=5 // pred_check_branch
        %255 = sbr.rel (%p252) target = $region36
      $region35: #{tpu_custom_call.1} parent=5 // pred_region
        %s256 = ssub.s32 %s19, 1
        %s257 = sand.u32 %s44, 1
        %s258 = scalar_lea.sflag [#allocation4], %s257
        %s259 = sand.u32 %s44, 1
        %s260 = smul.addr %s259, 16
        %s261 = scalar_lea.vmem [#allocation3], %s260
        // Predicated region
        $region37: #{tpu_custom_call.1} parent=35 // pred_check
          %p262 = pneg %p57
        $region38: #{tpu_custom_call.1} parent=35 // pred_check_branch
          %264 = sbr.rel (%p262) target = $region40
        $region39: #{tpu_custom_call.1} parent=35 // pred_region
          %266 = dma.done %s258, 256
        $region40: #{tpu_custom_call.1} parent=35 // pred_fallthru
          _
        %s267 = sand.u32 %s24, 1
        %s268 = scalar_lea.sflag [#allocation7], %s267
        %s269 = sand.u32 %s72, 1
        %s270 = smul.addr %s269, 128
        %s271 = scalar_lea.vmem [#allocation6], %s270
        // Predicated region
        $region41: #{tpu_custom_call.1} parent=35 // pred_check
          %p272 = pneg %p85
        $region42: #{tpu_custom_call.1} parent=35 // pred_check_branch
          %274 = sbr.rel (%p272) target = $region44
        $region43: #{tpu_custom_call.1} parent=35 // pred_region
          %276 = dma.done %s268, 2048
        $region44: #{tpu_custom_call.1} parent=35 // pred_fallthru
          _
        %s277 = sand.u32 %s24, 1
        %s278 = scalar_lea.sflag [#allocation7], %s277
        %s279 = sand.u32 %s98, 1
        %s280 = scalar_lea.vmem [#allocation8], %s279
        // Predicated region
        $region45: #{tpu_custom_call.1} parent=35 // pred_check
          %p281 = pneg %p111
        $region46: #{tpu_custom_call.1} parent=35 // pred_check_branch
          %283 = sbr.rel (%p281) target = $region48
        $region47: #{tpu_custom_call.1} parent=35 // pred_region
          %285 = dma.done %s278, 16
        $region48: #{tpu_custom_call.1} parent=35 // pred_fallthru
          _
        %s286 = sand.u32 %s44, 1
        %s287 = scalar_lea.sflag [#allocation4], %s286
        %s288 = sand.u32 %s44, 1
        %s289 = smul.addr %s288, 16
        %s290 = scalar_lea.vmem [#allocation3], %s289
        %p291 = pneg %p57
        %p292 = pneg %p54
        %s293 = sand.u32 %s24, 1
        %s294 = scalar_lea.sflag [#allocation7], %s293
        %s295 = sand.u32 %s72, 1
        %s296 = smul.addr %s295, 128
        %s297 = scalar_lea.vmem [#allocation6], %s296
        %p298 = pneg %p85
        %p299 = pneg %p82
        %s300 = sand.u32 %s24, 1
        %s301 = scalar_lea.sflag [#allocation7], %s300
        %s302 = sand.u32 %s98, 1
        %s303 = scalar_lea.vmem [#allocation8], %s302
        %p304 = pneg %p111
        %p305 = pneg %p108
        %p306 = scmp.lt.s32.totalorder %s28, 1
        %s307 = scalar_select %p306, %s28, 1
        %s308 = scalar_lea.vmem %s3, %s307
        %p309 = pneg %p137
        %p310 = pneg %p134
        %p311 = pneg %p163
        %p312 = pneg %p160
        %s313 = sand.u32 %s150, 1
        %s314 = scalar_lea.sflag [#allocation5], %s313
        %s315 = sand.u32 %s150, 1
        %s316 = smul.addr %s315, 16
        %s317 = scalar_lea.vmem [#allocation9], %s316
        %s318 = smul.u32 16, %s29
        %p319 = scmp.lt.s32.totalorder %s28, 1
        %s320 = scalar_select %p319, %s28, 1
        %s321 = scalar_lea.vmem %s3, %s320
        %p322 = scmp.eq.s32.totalorder %s29, 0
        // Predicated region
        $region49: #{tpu_custom_call.1} parent=35 // pred_check
          %p323 = pneg %p322
        $region50: #{tpu_custom_call.1} parent=35 // pred_check_branch
          %325 = sbr.rel (%p323) target = $region52
        $region51: #{tpu_custom_call.1} parent=35 // pred_region
          %326 = vst [vmem:[#allocation2] sm:$0xff] 0.0
          %327 = vst [vmem:[#allocation2 + $0x8] sm:$0xff] 0.0
        $region52: #{tpu_custom_call.1} parent=35 // pred_fallthru
          _
        %v328 = vld [vmem:[#allocation2] sm:$0xff]
        %v329 = vld [vmem:[#allocation2 + $0x8] sm:$0xff]
        %v330 = vld [vmem:[%s261] sm:$0xff]
        %v331 = vld [vmem:[%s261 + $0x8] sm:$0xff]
        %v332 = vld [vmem:[%s271] sm:$0xff]
        %v333 = vld [vmem:[%s271 + $0x8] sm:$0xff]
        %v334 = vld [vmem:[%s271 + $0x10] sm:$0xff]
        %v335 = vld [vmem:[%s271 + $0x18] sm:$0xff]
        %v336 = vld [vmem:[%s271 + $0x20] sm:$0xff]
        %v337 = vld [vmem:[%s271 + $0x28] sm:$0xff]
        %v338 = vld [vmem:[%s271 + $0x30] sm:$0xff]
        %v339 = vld [vmem:[%s271 + $0x38] sm:$0xff]
        %v340 = vld [vmem:[%s271 + $0x40] sm:$0xff]
        %v341 = vld [vmem:[%s271 + $0x48] sm:$0xff]
        %v342 = vld [vmem:[%s271 + $0x50] sm:$0xff]
        %v343 = vld [vmem:[%s271 + $0x58] sm:$0xff]
        %v344 = vld [vmem:[%s271 + $0x60] sm:$0xff]
        %v345 = vld [vmem:[%s271 + $0x68] sm:$0xff]
        %v346 = vld [vmem:[%s271 + $0x70] sm:$0xff]
        %v347 = vld [vmem:[%s271 + $0x78] sm:$0xff]
        %348 = vmatpush.msra.mxu0 %v347
        %349 = vmatpush.msra.mxu0 %v346
        %350 = vmatpush.msra.mxu0 %v345
        %351 = vmatpush.msra.mxu0 %v344
        %352 = vmatpush.msra.mxu0 %v343
        %353 = vmatpush.msra.mxu0 %v342
        %354 = vmatpush.msra.mxu0 %v341
        %355 = vmatpush.msra.mxu0 %v340
        %356 = vmatpush.msra.mxu0 %v339
        %357 = vmatpush.msra.mxu0 %v338
        %358 = vmatpush.msra.mxu0 %v337
        %359 = vmatpush.msra.mxu0 %v336
        %360 = vmatpush.msra.mxu0 %v335
        %361 = vmatpush.msra.mxu0 %v334
        %362 = vmatpush.msra.mxu0 %v333
        %363 = vmatpush.msra.mxu0 %v332
        %364 = vmatmul.f32.gmra.mxu0 %v330
        %v365 = vpop.f32.mrf.mxu0
        %v366 = vadd.f32 0.0, %v365
        %367 = vmatmul.f32.gmra.mxu0 %v331
        %v368 = vpop.f32.mrf.mxu0
        %v369 = vadd.f32 0.0, %v368
        %370 = vdwg.mxu0
        %v371 = vadd.f32 %v328, %v366
        %v372 = vadd.f32 %v329, %v369
        %373 = vst [vmem:[#allocation2] sm:$0xff] %v371
        %374 = vst [vmem:[#allocation2 + $0x8] sm:$0xff] %v372
        %p375 = scmp.eq.s32.totalorder %s29, 1
        // Predicated region
        $region53: #{tpu_custom_call.1} parent=35 // pred_check
          %p376 = pneg %p375
        $region54: #{tpu_custom_call.1} parent=35 // pred_check_branch
          %378 = sbr.rel (%p376) target = $region56
        $region55: #{tpu_custom_call.1} parent=35 // pred_region
          %v379 = vld [vmem:[#allocation2] sm:$0xff]
          %v380 = vld [vmem:[#allocation2 + $0x8] sm:$0xff]
          %v381 = vadd.f32 %v379, %v380
          %v382 = vrot.slane %v381, 4
          %v383 = vadd.f32 %v381, %v382
          %v384 = vrot.slane %v383, 2
          %v385 = vadd.f32 %v383, %v384
          %v386 = vrot.slane %v385, 1
          %v387 = vadd.f32 %v385, %v386
          %v388 = vrcp.pop 16.0
          %v389 = vmul.f32 16.0, %v388
          %v390 = vsub.f32 1.0, %v389
          %v391 = vmul.f32 %v388, %v390
          %v392 = vadd.f32 %v388, %v391
          %vm393 = vweird.f32 %v388
          %v394 = vsel %vm393, %v388, %v392
          %v395 = vmul.f32 %v387, %v394
          %v396 = vmul.f32 %v379, %v379
          %v397 = vmul.f32 %v380, %v380
          %v398 = vadd.f32 %v396, %v397
          %v399 = vrot.slane %v398, 4
          %v400 = vadd.f32 %v398, %v399
          %v401 = vrot.slane %v400, 2
          %v402 = vadd.f32 %v400, %v401
          %v403 = vrot.slane %v402, 1
          %v404 = vadd.f32 %v402, %v403
          %v405 = vmul.f32 %v404, %v394
          %v406 = vmul.f32 %v395, %v395
          %v407 = vsub.f32 %v405, %v406
          %v408 = vmax.f32 %v407, 0.0
          %v409 = vld [vmem:[%s280] sm:$0x1]
          %v410 = vadd.f32 %v408, 1e-05
          %v411 = vrsqrt.pop %v410
          %v412 = vmul.f32 %v411, %v410
          %v413 = vmul.f32 %v412, %v411
          %v414 = vmul.f32 0.5, %v413
          %v415 = vsub.f32 1.5, %v414
          %v416 = vmul.f32 %v411, %v415
          %vm417 = vweird.f32 %v410
          %vm418 = vweird.f32 %v411
          %vm419 = vmor %vm417, %vm418
          %v420 = vsel %vm419, %v411, %v416
          %v421 = vmul.f32 %v409, %v420
          %v422 = vld [vmem:[%s321] sm:$0x1]
          %v423 = vmul.f32 %v395, %v421
          %v424 = vsub.f32 %v422, %v423
          %v426 = vperm.slane %v421, 0
          %v428 = vmul.f32 %v379, %v426
          %v429 = vmul.f32 %v380, %v426
          %v431 = vperm.slane %v424, 0
          %v433 = vadd.f32 %v428, %v431
          %v434 = vadd.f32 %v429, %v431
          %v435 = vmax.f32 %v433, 0.0
          %v436 = vmax.f32 %v434, 0.0
          %437 = vst [vmem:[%s317] sm:$0xff] %v435
          %438 = vst [vmem:[%s317 + $0x8] sm:$0xff] %v436
        $region56: #{tpu_custom_call.1} parent=35 // pred_fallthru
          _
        %s439 = sand.u32 %s150, 1
        %s440 = scalar_lea.sflag [#allocation5], %s439
        %s441 = sand.u32 %s150, 1
        %s442 = smul.addr %s441, 16
        %s443 = scalar_lea.vmem [#allocation9], %s442
        // Predicated region
        $region57: #{tpu_custom_call.1} parent=35 // pred_check
          %p444 = pneg %p160
        $region58: #{tpu_custom_call.1} parent=35 // pred_check_branch
          %446 = sbr.rel (%p444) target = $region60
        $region59: #{tpu_custom_call.1} parent=35 // pred_region
          %448 = vsyncadd %s440, 0
          %s449 = smul.addr %s28, 8
          %s450 = scalar_lea.hbm %s4, %s449
          %s451 = sshll.u32 %s443, 4
          %s452 = int_to_ptr.vmem [resolvable:$true] %s451
          %s453 = sshll.u32 %s450, 4
          %s454 = int_to_ptr.hbm [resolvable:$true] %s453
          %459 = dma.vmem_to_hbm [thread:$0]  %s452, 256, %s454, %s440, 128, 256, 8
        $region60: #{tpu_custom_call.1} parent=35 // pred_fallthru
          _
      $region36: #{tpu_custom_call.1} parent=5 // pred_fallthru
        _
      %p460 = scmp.le.s32.totalorder 2, %s19
      // Predicated region
      $region61: #{tpu_custom_call.1} parent=5 // pred_check
        %p461 = pneg %p460
      $region62: #{tpu_custom_call.1} parent=5 // pred_check_branch
        %463 = sbr.rel (%p461) target = $region64
      $region63: #{tpu_custom_call.1} parent=5 // pred_region
        %s464 = ssub.s32 %s19, 2
        // Predicated region
        $region65: #{tpu_custom_call.1} parent=63 // pred_check
          %p465 = pneg %p166
        $region66: #{tpu_custom_call.1} parent=63 // pred_check_branch
          %467 = sbr.rel (%p465) target = $region68
        $region67: #{tpu_custom_call.1} parent=63 // pred_region
          %s468 = sand.u32 %s151, 1
          %s469 = scalar_lea.sflag [#allocation5], %s468
          %s470 = sand.u32 %s151, 1
          %s471 = smul.addr %s470, 16
          %s472 = scalar_lea.vmem [#allocation9], %s471
          %474 = dma.done %s469, 256
        $region68: #{tpu_custom_call.1} parent=63 // pred_fallthru
          _
      $region64: #{tpu_custom_call.1} parent=5 // pred_fallthru
        _
    $region6: #{tpu_custom_call.1} parent=1 // loop_footer
      %s23 = sadd.s32 1, %s19
    $region7: #{tpu_custom_call.1} parent=1 // loop_footer_branch
      %18 = sbr.rel target = $region3
    $region8: #{tpu_custom_call.1} parent=1 // loop_exit
      _
    %475 = vsyncpa [#allocation4], 1
    %s476 = scalar_lea.sflag [#allocation4], 1
    %477 = vsyncpa %s476, 1
    %478 = vsyncpa [#allocation7], 1
    %s479 = scalar_lea.sflag [#allocation7], 1
    %480 = vsyncpa %s479, 1
    %481 = vsyncpa [#allocation5], 1
    %s482 = scalar_lea.sflag [#allocation5], 1
    %483 = vsyncpa %s482, 1

</llo_original>
